<compile_context>
chip_gen: v5e
topology: v5e:2x2
jax: 0.10.0
libtpu: 0.0.40
codegen_flags: <defaults>
</compile_context>

<pallas_src>
import math
from functools import partial

import jax
import jax.numpy as jnp
import numpy as np
from jax.experimental import pallas as pl
from jax.experimental.pallas import tpu as pltpu

EPS = 1e-6


def _layer_norm_kernel(scal_ref, x_ref, o_ref, *, eps):
    # scal_ref: SMEM (2,) = [alpha, bias];  x_ref / o_ref: VMEM (tile, D)
    x = x_ref[...]
    d_model = x.shape[-1]

    mean = jnp.mean(x, axis=-1, keepdims=True)
    diff = x - mean
    # unbiased variance (Bessel correction, N-1) to match torch.std default
    var = jnp.sum(diff * diff, axis=-1, keepdims=True) * (1.0 / (d_model - 1))
    inv = pl.reciprocal(jnp.sqrt(var) + eps, approx=False)

    o_ref[...] = scal_ref[0] * (diff * inv) + scal_ref[1]


def _pick_row_tile(n):
    """Largest sublane-aligned row tile that divides n (else the whole array)."""
    for t in (512, 256, 128, 64, 32, 16, 8):
        if n >= t and n % t == 0:
            return t
    return n


def layer_norm_pallas(x, alpha, bias, eps=EPS):
    orig_shape = x.shape
    d_model = orig_shape[-1]
    n_rows = int(np.prod(orig_shape[:-1])) if len(orig_shape) > 1 else 1
    x2 = jnp.asarray(x, jnp.float32).reshape(n_rows, d_model)

    # scalar parameters -> (2,) f32 array kept in SMEM
    scal = jnp.stack([jnp.asarray(alpha, jnp.float32).reshape(()),
                      jnp.asarray(bias, jnp.float32).reshape(())])

    tile = _pick_row_tile(n_rows)
    grid = (n_rows // tile,)

    out = pl.pallas_call(
        partial(_layer_norm_kernel, eps=eps),
        out_shape=jax.ShapeDtypeStruct((n_rows, d_model), jnp.float32),
        grid=grid,
        in_specs=[pl.BlockSpec(memory_space=pltpu.MemorySpace.SMEM),   # alpha / bias
                  pl.BlockSpec((tile, d_model), lambda i: (i, 0))],    # x rows
        out_specs=pl.BlockSpec((tile, d_model), lambda i: (i, 0)),
        compiler_params=pltpu.CompilerParams(dimension_semantics=("parallel",)),
    )(scal, x2)

    return out.reshape(orig_shape).astype(x.dtype)


# ---------------- pure-JAX reference (for correctness check) ----------------
def layer_norm_ref(x, alpha, bias, eps=EPS):
    mean = jnp.mean(x, axis=-1, keepdims=True)
    std = jnp.std(x, axis=-1, keepdims=True, ddof=1)   # unbiased, like torch
    return alpha * (x - mean) / (std + eps) + bias


if __name__ == "__main__":
    key = jax.random.PRNGKey(0)
    k1, k2 = jax.random.split(key)

    # small shapes consistent with the module: batch=2, seq=8, d_model=32
    x = jax.random.normal(k1, (2, 8, 32), jnp.float32)
    alpha = jnp.float32(1.25)     # nn.Parameter(torch.ones(1))  -> scalar scale
    bias = jnp.float32(-0.37)     # nn.Parameter(torch.zeros(1)) -> scalar shift

    out = jax.block_until_ready(layer_norm_pallas(x, alpha, bias))
    ref = jax.block_until_ready(layer_norm_ref(x, alpha, bias))
    np.testing.assert_allclose(np.asarray(out), np.asarray(ref), rtol=1e-5, atol=1e-5)

    # secondary, tile-aligned shape that exercises the row-tiled grid path
    x2 = jax.random.normal(k2, (4, 128, 256), jnp.float32)
    out2 = jax.block_until_ready(layer_norm_pallas(x2, alpha, bias))
    ref2 = jax.block_until_ready(layer_norm_ref(x2, alpha, bias))
    np.testing.assert_allclose(np.asarray(out2), np.asarray(ref2), rtol=1e-5, atol=1e-5)

    print("KERNEL_OK")
</pallas_src>

<mosaic_0001>
module attributes {stable_mosaic.version = 11 : i64} {
  func.func @_layer_norm_kernel(%arg0: i32, %arg1: memref<2xf32, #tpu.memory_space<smem>>, %arg2: memref<16x32xf32, #tpu.memory_space<vmem>>, %arg3: memref<16x32xf32, #tpu.memory_space<vmem>>) attributes {dimension_semantics = [#tpu.dimension_semantics<parallel>], iteration_bounds = array<i64: 1>, scalar_prefetch = 0 : i64, scratch_operands = 0 : i64, tpu.core_type = #tpu.core_type<tc>, window_params = [{transform_indices = @transform_0, window_bounds = array<i64: 2>}, {transform_indices = @transform_1, window_bounds = array<i64: 16, 32>}, {transform_indices = @transform_2, window_bounds = array<i64: 16, 32>}]} {
    %c0 = arith.constant 0 : index
    %c0_0 = arith.constant 0 : index
    %0 = vector.load %arg2[%c0, %c0_0] : memref<16x32xf32, #tpu.memory_space<vmem>>, vector<16x32xf32>
    %cst = arith.constant dense<0.000000e+00> : vector<16xf32>
    %1 = vector.multi_reduction <add>, %0, %cst [1] : vector<16x32xf32> to vector<16xf32>
    %2 = vector.shape_cast %1 : vector<16xf32> to vector<16x1xf32>
    %cst_1 = arith.constant 3.200000e+01 : f32
    %3 = vector.broadcast %cst_1 : f32 to vector<16x1xf32>
    %4 = arith.divf %2, %3 : vector<16x1xf32>
    %5 = vector.broadcast %4 : vector<16x1xf32> to vector<16x32xf32>
    %6 = arith.subf %0, %5 : vector<16x32xf32>
    %7 = arith.mulf %6, %6 : vector<16x32xf32>
    %cst_2 = arith.constant dense<0.000000e+00> : vector<16xf32>
    %8 = vector.multi_reduction <add>, %7, %cst_2 [1] : vector<16x32xf32> to vector<16xf32>
    %9 = vector.shape_cast %8 : vector<16xf32> to vector<16x1xf32>
    %cst_3 = arith.constant 0.0322580636 : f32
    %10 = vector.broadcast %cst_3 : f32 to vector<16x1xf32>
    %11 = arith.mulf %9, %10 : vector<16x1xf32>
    %12 = math.sqrt %11 : vector<16x1xf32>
    %cst_4 = arith.constant 9.99999997E-7 : f32
    %13 = vector.broadcast %cst_4 : f32 to vector<16x1xf32>
    %14 = arith.addf %12, %13 : vector<16x1xf32>
    %15 = tpu.reciprocal %14 : vector<16x1xf32> -> vector<16x1xf32>
    %c0_5 = arith.constant 0 : index
    %16 = memref.load %arg1[%c0_5] : memref<2xf32, #tpu.memory_space<smem>>
    %17 = vector.broadcast %15 : vector<16x1xf32> to vector<16x32xf32>
    %18 = arith.mulf %6, %17 : vector<16x32xf32>
    %19 = vector.broadcast %16 : f32 to vector<16x32xf32>
    %20 = arith.mulf %19, %18 : vector<16x32xf32>
    %c1 = arith.constant 1 : index
    %21 = memref.load %arg1[%c1] : memref<2xf32, #tpu.memory_space<smem>>
    %22 = vector.broadcast %21 : f32 to vector<16x32xf32>
    %23 = arith.addf %20, %22 : vector<16x32xf32>
    %c0_6 = arith.constant 0 : index
    %c0_7 = arith.constant 0 : index
    %24 = vector.load %arg3[%c0_6, %c0_7] : memref<16x32xf32, #tpu.memory_space<vmem>>, vector<16x32xf32>
    tpu.vector_store %arg3[%c0_6, %c0_7], %23 {strides = array<i32>} : memref<16x32xf32, #tpu.memory_space<vmem>>, vector<16x32xf32>,
    return
  }
  func.func @transform_0(%arg0: i32) -> i32 {
    %c0_i32 = arith.constant 0 : i32
    %c0_i32_0 = arith.constant 0 : i32
    return %c0_i32 : i32
  }
  func.func @transform_1(%arg0: i32) -> (i32, i32) {
    %c0_i32 = arith.constant 0 : i32
    %c0_i32_0 = arith.constant 0 : i32
    return %arg0, %c0_i32 : i32, i32
  }
  func.func @transform_2(%arg0: i32) -> (i32, i32) {
    %c0_i32 = arith.constant 0 : i32
    %c0_i32_0 = arith.constant 0 : i32
    return %arg0, %c0_i32 : i32, i32
  }
}

</mosaic_0001>

<llo_original>
// kernel: tpu_custom_call.1
$region0: #{tpu_custom_call.1}
  #allocation0 [shape = 'u32[]', space=smem, size = 0x4, offset = 0x4, fixed_abs, tag = 'smem constant byte address 0x4 - core index']
  #allocation1 [shape = 'u32[72,128]{1,0:T(1,128)}', space=vmem, size = 0x9000, scoped, tag = 'internal scratch']
  %s0 = inlined_call_operand.hbm [shape: f32[2], index: 0, kind: input, shape index: {}]
  %s1 = inlined_call_operand.hbm [shape: f32[16,32], index: 1, kind: input, shape index: {}]
  %s2 = inlined_call_operand.hbm [shape: f32[16,32], index: 2, kind: output, shape index: {}]
  %s3 = sld [smem:[#allocation0]]
  $region26: #{tpu_custom_call.1} parent=0
    _
  %s5 = ssub.s32 1, %s3
  %s6 = scalar_select 0, %s5, %s3
  $region1: #{tpu_custom_call.1} parent=0
    #allocation2 [shape = 'u8[512]{0}', space=smem, size = 0x200, scoped, tag = 'input window, operand 0, single buffered']
    #allocation3 [shape = 's32[1]{0}', space=sflag, size = 0x4, scoped, tag = 'scoped memory for tpu_custom_call.1']
    #allocation4 [shape = 's32[1]{0}', space=sflag, size = 0x4, scoped, tag = 'scoped memory for tpu_custom_call.1']
    #allocation5 [shape = 's32[1]{0}', space=sflag, size = 0x4, scoped, tag = 'scoped memory for tpu_custom_call.1']
    #allocation6 [shape = 'u8[8192]{0}', space=vmem, size = 0x2000, scoped, tag = 'input window, operand 1, single buffered']
    #allocation7 [shape = 'u8[8192]{0}', space=vmem, size = 0x2000, scoped, tag = 'output window, operand 0, single buffered']
    %7 = vsyncpa [#allocation5], 0
    %8 = vsyncpa [#allocation3], 0
    %9 = vsyncpa [#allocation4], 0
    // Predicated region
    $region2: #{tpu_custom_call.1} parent=1 // pred_check
      _
    $region3: #{tpu_custom_call.1} parent=1 // pred_check_branch
      %11 = sbr.rel (0) target = $region5
    $region4: #{tpu_custom_call.1} parent=1 // pred_region
      %13 = vsyncadd [#allocation5], 0
      %s15 = sshll.u32 %s0, 4
      %s16 = int_to_ptr.hbm [resolvable:$true] %s15
      %18 = dma.hbm_to_smem %s16, 16, [#allocation2], [#allocation5]
    $region5: #{tpu_custom_call.1} parent=1 // pred_fallthru
      _
    // Predicated region
    $region6: #{tpu_custom_call.1} parent=1 // pred_check
      _
    $region7: #{tpu_custom_call.1} parent=1 // pred_check_branch
      %20 = sbr.rel (0) target = $region9
    $region8: #{tpu_custom_call.1} parent=1 // pred_region
      %22 = vsyncadd [#allocation3], 0
      %s23 = sshll.u32 %s1, 4
      %s24 = int_to_ptr.hbm [resolvable:$true] %s23
      %s25 = sshll.u32 [#allocation6], 4
      %s26 = int_to_ptr.vmem [resolvable:$true] %s25
      %31 = dma.hbm_to_vmem [thread:$0]  %s24, 256, %s26, [#allocation3], 128, 128, 8
    $region9: #{tpu_custom_call.1} parent=1 // pred_fallthru
      _
    // Predicated region
    $region10: #{tpu_custom_call.1} parent=1 // pred_check
      _
    $region11: #{tpu_custom_call.1} parent=1 // pred_check_branch
      %33 = sbr.rel (0) target = $region13
    $region12: #{tpu_custom_call.1} parent=1 // pred_region
      %35 = dma.done [#allocation5], 16
    $region13: #{tpu_custom_call.1} parent=1 // pred_fallthru
      _
    // Predicated region
    $region14: #{tpu_custom_call.1} parent=1 // pred_check
      _
    $region15: #{tpu_custom_call.1} parent=1 // pred_check_branch
      %37 = sbr.rel (0) target = $region17
    $region16: #{tpu_custom_call.1} parent=1 // pred_region
      %39 = dma.done [#allocation3], 256
    $region17: #{tpu_custom_call.1} parent=1 // pred_fallthru
      _
    %40 = sfence
    %v41 = vld [vmem:[#allocation6] sm:$0xff]
    %v42 = vld [vmem:[#allocation6 + $0x8] sm:$0xff]
    %vm43 = vcmask 261120
    %v44 = vsel %vm43, %v41, 0.0
    %45 = vadd.xlane.f32.xlu0 %v44
    %v46 = vpop.xlane.xlu0 %45
    %v47 = vsel %vm43, %v42, 0.0
    %48 = vadd.xlane.f32.xlu0 %v47
    %v49 = vpop.xlane.xlu0 %48
    %v50 = vrcp.pop 32.0
    %v51 = vmul.f32 32.0, %v50
    %v52 = vsub.f32 1.0, %v51
    %v53 = vmul.f32 %v50, %v52
    %v54 = vadd.f32 %v50, %v53
    %vm55 = vweird.f32 %v50
    %v56 = vsel %vm55, %v50, %v54
    %v57 = vmul.f32 %v46, %v56
    %v58 = vmul.f32 %v49, %v56
    %v59 = vsub.f32 %v41, %v57
    %v60 = vsub.f32 %v42, %v58
    %v61 = vmul.f32 %v59, %v59
    %v62 = vmul.f32 %v60, %v60
    %v63 = vsel %vm43, %v61, 0.0
    %64 = vadd.xlane.f32.xlu0 %v63
    %v65 = vpop.xlane.xlu0 %64
    %v66 = vsel %vm43, %v62, 0.0
    %67 = vadd.xlane.f32.xlu0 %v66
    %v68 = vpop.xlane.xlu0 %67
    %v69 = vmul.f32 %v65, 0.032258064
    %v70 = vmul.f32 %v68, 0.032258064
    %v71 = vrsqrt.pop %v69
    %v72 = vmul.f32 %v71, %v69
    %v73 = vmul.f32 %v72, %v71
    %v74 = vmul.f32 0.5, %v73
    %v75 = vsub.f32 1.5, %v74
    %v76 = vmul.f32 %v71, %v75
    %v77 = vmul.f32 %v69, %v76
    %vm78 = vcmp.eq.f32.partialorder %v69, inf
    %v79 = vsel %vm78, %v69, %v77
    %vm80 = vcmp.eq.f32.partialorder %v69, 0.0
    %v81 = vand.u32 %v69, 2147483648
    %v82 = vsel %vm80, %v81, %v79
    %v83 = vrsqrt.pop %v70
    %v84 = vmul.f32 %v83, %v70
    %v85 = vmul.f32 %v84, %v83
    %v86 = vmul.f32 0.5, %v85
    %v87 = vsub.f32 1.5, %v86
    %v88 = vmul.f32 %v83, %v87
    %v89 = vmul.f32 %v70, %v88
    %vm90 = vcmp.eq.f32.partialorder %v70, inf
    %v91 = vsel %vm90, %v70, %v89
    %vm92 = vcmp.eq.f32.partialorder %v70, 0.0
    %v93 = vand.u32 %v70, 2147483648
    %v94 = vsel %vm92, %v93, %v91
    %v95 = vadd.f32 %v82, 1e-06
    %v96 = vadd.f32 %v94, 1e-06
    %v97 = vrcp.pop %v95
    %v98 = vmul.f32 %v95, %v97
    %v99 = vsub.f32 1.0, %v98
    %v100 = vmul.f32 %v97, %v99
    %v101 = vadd.f32 %v97, %v100
    %vm102 = vweird.f32 %v95
    %vm103 = vweird.f32 %v97
    %vm104 = vmor %vm102, %vm103
    %v105 = vsel %vm104, %v97, %v101
    %v106 = vand.u32 2147483647, %v95
    %vm107 = vcmp.eq.f32.partialorder %v106, 8.507059e+37
    %v108 = vand.u32 %v95, 2147483648
    %v109 = vor.u32 1.1754944e-38, %v108
    %v110 = vsel %vm107, %v109, %v105
    %v111 = vrcp.pop %v96
    %v112 = vmul.f32 %v96, %v111
    %v113 = vsub.f32 1.0, %v112
    %v114 = vmul.f32 %v111, %v113
    %v115 = vadd.f32 %v111, %v114
    %vm116 = vweird.f32 %v96
    %vm117 = vweird.f32 %v111
    %vm118 = vmor %vm116, %vm117
    %v119 = vsel %vm118, %v111, %v115
    %v120 = vand.u32 2147483647, %v96
    %vm121 = vcmp.eq.f32.partialorder %v120, 8.507059e+37
    %v122 = vand.u32 %v96, 2147483648
    %v123 = vor.u32 1.1754944e-38, %v122
    %v124 = vsel %vm121, %v123, %v119
    %s125 = sld [smem:[#allocation2]]
    %v126 = vmul.f32 %v59, %v110
    %v127 = vmul.f32 %v60, %v124
    %v128 = vstv %s125
    %v129 = vmul.f32 %v128, %v126
    %v130 = vmul.f32 %v128, %v127
    %s131 = sld [smem:[#allocation2 + $0x1]]
    %v132 = vstv %s131
    %v133 = vadd.f32 %v129, %v132
    %v134 = vadd.f32 %v130, %v132
    %135 = vst.msk [vmem:[#allocation7] sm:$0xff] %vm43, %v133
    %136 = vst.msk [vmem:[#allocation7 + $0x8] sm:$0xff] %vm43, %v134
    // Predicated region
    $region18: #{tpu_custom_call.1} parent=1 // pred_check
      _
    $region19: #{tpu_custom_call.1} parent=1 // pred_check_branch
      %138 = sbr.rel (0) target = $region21
    $region20: #{tpu_custom_call.1} parent=1 // pred_region
      %140 = vsyncadd [#allocation4], 0
      %s141 = sshll.u32 [#allocation7], 4
      %s142 = int_to_ptr.vmem [resolvable:$true] %s141
      %s143 = sshll.u32 %s2, 4
      %s144 = int_to_ptr.hbm [resolvable:$true] %s143
      %149 = dma.vmem_to_hbm [thread:$0]  %s142, 256, %s144, [#allocation4], 128, 128, 8
    $region21: #{tpu_custom_call.1} parent=1 // pred_fallthru
      _
    // Predicated region
    $region22: #{tpu_custom_call.1} parent=1 // pred_check
      _
    $region23: #{tpu_custom_call.1} parent=1 // pred_check_branch
      %151 = sbr.rel (0) target = $region25
    $region24: #{tpu_custom_call.1} parent=1 // pred_region
      %153 = dma.done [#allocation4], 256
    $region25: #{tpu_custom_call.1} parent=1 // pred_fallthru
      _
    %154 = vsyncpa [#allocation3], 1
    %155 = vsyncpa [#allocation4], 1
    %156 = vsyncpa [#allocation5], 1

</llo_original>
